<compile_context>
chip_gen: v7x
topology: tpu7x:2x2x1
jax: 0.10.0
libtpu: 0.0.40
codegen_flags: <defaults>
</compile_context>

<pallas_src>
import jax
import jax.numpy as jnp
import numpy as np
from jax.experimental import pallas as pl
from jax.experimental.pallas import tpu as pltpu

EPS = 1e-5  # PyTorch BatchNorm2d default eps
HP = jax.lax.Precision.HIGHEST  # only used by the plain-JAX reference


# ----------------------------- kernel ---------------------------------------


def _make_trb_kernel(*, wcm, wco, id_lo, has_resample):
    """Build the fused temporal-residual-block kernel body.

    x_ref : (Rb, Wp*Ci)         bf16  temporally padded input rows (lane-flat)
    t1_ref: (Wp*Ci, wcm[+wco])  bf16  conv1 (+ 1x1 resample) band weights
    t2_ref: (wcm, wco)          bf16  conv2 band weights (zero pad folded in)
    sh_ref: (2, max(wcm,wco))   f32   row0 = BN1 shift, row1 = BN2(+resample) shift
    o_ref : (Rb, wco)           f32   lane-dense output rows
    """
    if has_resample:
        def kernel(x_ref, t1_ref, t2_ref, sh_ref, o_ref):
            x = x_ref[...]
            sh = sh_ref[...]
            # conv1(+BN1 scale) and the 1x1 resample(+BN scale) share one matmul.
            y = jnp.dot(x, t1_ref[...], preferred_element_type=jnp.float32)
            h1 = jnp.maximum(y[:, :wcm] + sh[0:1, :wcm], 0.0).astype(jnp.bfloat16)
            ident = y[:, wcm:wcm + wco]
            acc = ident + jnp.dot(h1, t2_ref[...],
                                  preferred_element_type=jnp.float32)
            o_ref[...] = jnp.maximum(acc + sh[1:2, :wco], 0.0)
    else:
        def kernel(x_ref, t1_ref, t2_ref, sh_ref, o_ref):
            x = x_ref[...]
            sh = sh_ref[...]
            y = jnp.dot(x, t1_ref[...], preferred_element_type=jnp.float32)
            h1 = jnp.maximum(y[:, :wcm] + sh[0:1, :wcm], 0.0).astype(jnp.bfloat16)
            # identity residual: contiguous lane slice of the unpadded input
            # (Ci == Co here), no identity matmul.
            ident = x[:, id_lo:id_lo + wco].astype(jnp.float32)
            acc = ident + jnp.dot(h1, t2_ref[...],
                                  preferred_element_type=jnp.float32)
            o_ref[...] = jnp.maximum(acc + sh[1:2, :wco], 0.0)
    return kernel


# ----------------------------- wrapper / glue --------------------------------


def _fold_bn(gamma, beta, mean, var, conv_bias):
    # BN(conv(x)+b) == conv(x)*sc + sh  (eval mode)
    sc = gamma / jnp.sqrt(var + EPS)
    sh = beta - mean * sc + conv_bias * sc
    return sc.astype(jnp.float32), sh.astype(jnp.float32)


def _toeplitz(w_k, w_in, w_out, *, shift):
    """Block-banded conv weight.

    (x_flat @ T)[:, w*cout + co] = sum_{kw,ci} x_flat[:, (w+kw+shift)*cin + ci]
                                               * w_k[kw, ci, co]
    Taps whose input index falls outside [0, w_in) are omitted (== zero pad).
    """
    K, cin, cout = w_k.shape
    t = jnp.zeros((w_in * cin, w_out * cout), jnp.float32)
    for w in range(w_out):
        for kw in range(K):
            wi = w + kw + shift
            if 0 <= wi < w_in:
                t = t.at[wi * cin:(wi + 1) * cin,
                         w * cout:(w + 1) * cout].set(w_k[kw])
    return t


def _pick_r_blk(R):
    """Largest multiple-of-16 divisor of R, <= 256 rows, preferring >= 2 grid
    steps so both v7x TensorCores get work."""
    cands = [d for d in range(16, min(R, 256) + 1, 16) if R % d == 0]
    for d in reversed(cands):
        if R // d >= 2:
            return d
    return cands[-1] if cands else R


def temporal_residual_block(x_nchw, p, *, pad=1, r_blk=None):
    """Fused temporalResidualBlock forward (eval mode). NCHW in -> NCHW out."""
    N, Ci, H, W = x_nchw.shape
    Cm, _, _, K = p['w1'].shape
    Co = p['w2'].shape[0]
    has_resample = p.get('wr') is not None
    if not has_resample:
        assert Ci == Co, "identity residual requires in_channels == out_channels"
    R = N * H
    Wp = W + 2 * pad
    wcm, wco = W * Cm, W * Co
    wmax = max(wcm, wco)

    # ---- fold BN (eval) + conv bias into per-channel scale / shift ----
    sc1, sh1 = _fold_bn(p['g1'], p['beta1'], p['m1'], p['v1'], p['b1'])
    sc2, sh2 = _fold_bn(p['g2'], p['beta2'], p['m2'], p['v2'], p['b2'])

    # ---- block-banded weights with the BN scale folded in ----
    w1_k = jnp.transpose(p['w1'][:, :, 0, :], (2, 1, 0)) * sc1[None, None, :]  # (K,Ci,Cm)
    w2_k = jnp.transpose(p['w2'][:, :, 0, :], (2, 1, 0)) * sc2[None, None, :]  # (K,Cm,Co)
    t1 = _toeplitz(w1_k, Wp, W, shift=0)      # (Wp*Ci, W*Cm)  conv1 on padded x
    t2 = _toeplitz(w2_k, W, W, shift=-pad)    # (W*Cm, W*Co)   conv2, zero pad folded
    shift2 = sh2
    if has_resample:
        scr, shr = _fold_bn(p['gr'], p['betar'], p['mr'], p['vr'], p['br'])
        wr_k = p['wr'][:, :, 0, 0].T * scr[None, :]            # (Ci, Co)
        tr = _toeplitz(wr_k[None], Wp, W, shift=pad)           # (Wp*Ci, W*Co)
        t1 = jnp.concatenate([t1, tr], axis=1)  # conv1 + resample: one matmul
        shift2 = sh2 + shr

    # packed additive shifts (row 0: after conv1, row 1: after conv2+residual)
    shifts = jnp.zeros((2, wmax), jnp.float32)
    shifts = shifts.at[0, :wcm].set(jnp.tile(sh1, W))
    shifts = shifts.at[1, :wco].set(jnp.tile(shift2, W))

    # ---- glue: NCHW -> lane-flat (R, Wp*Ci), bf16 operands ----
    x_rwc = jnp.transpose(x_nchw, (0, 2, 3, 1)).reshape(R, W, Ci)
    x_flat = jnp.pad(x_rwc, ((0, 0), (pad, pad), (0, 0))).reshape(R, Wp * Ci)
    x_flat = x_flat.astype(jnp.bfloat16)
    t1 = t1.astype(jnp.bfloat16)
    t2 = t2.astype(jnp.bfloat16)

    if r_blk is None:
        r_blk = _pick_r_blk(R)
    assert R % r_blk == 0
    d_in = Wp * Ci
    n1 = t1.shape[1]

    kernel = _make_trb_kernel(wcm=wcm, wco=wco, id_lo=pad * Ci,
                              has_resample=has_resample)

    out = pl.pallas_call(
        kernel,
        out_shape=jax.ShapeDtypeStruct((R, wco), jnp.float32),
        grid=(R // r_blk,),
        in_specs=[
            pl.BlockSpec((r_blk, d_in), lambda r: (r, 0)),   # rows of x
            pl.BlockSpec((d_in, n1), lambda r: (0, 0)),      # conv1(+resample) weights
            pl.BlockSpec((wcm, wco), lambda r: (0, 0)),      # conv2 weights
            pl.BlockSpec((2, wmax), lambda r: (0, 0)),       # packed shifts
        ],
        out_specs=pl.BlockSpec((r_blk, wco), lambda r: (r, 0)),
        compiler_params=pltpu.CompilerParams(dimension_semantics=("parallel",)),
    )(x_flat, t1, t2, shifts)

    # glue: (R, W*Co) -> NCHW
    return jnp.transpose(out.reshape(N, H, W, Co), (0, 3, 1, 2))


# ----------------------------- reference + test ------------------------------


def reference_forward(x, p, pad=1):
    def conv(xx, w, b, padw):
        y = jax.lax.conv_general_dilated(
            xx, w, window_strides=(1, 1),
            padding=((0, 0), (padw, padw)),
            dimension_numbers=('NCHW', 'OIHW', 'NCHW'),
            precision=HP)
        return y + b[None, :, None, None]

    def bn(y, g, be, m, v):
        return ((y - m[None, :, None, None])
                / jnp.sqrt(v + EPS)[None, :, None, None]
                * g[None, :, None, None] + be[None, :, None, None])

    if p.get('wr') is not None:
        ident = bn(conv(x, p['wr'], p['br'], 0), p['gr'], p['betar'], p['mr'], p['vr'])
    else:
        ident = x
    f = jax.nn.relu(bn(conv(x, p['w1'], p['b1'], pad), p['g1'], p['beta1'], p['m1'], p['v1']))
    f = bn(conv(f, p['w2'], p['b2'], pad), p['g2'], p['beta2'], p['m2'], p['v2'])
    return jax.nn.relu(f + ident)


def _make_block_params(key, *, cin, cmid, cout, k, resample, wscale=0.2):
    ks = jax.random.split(key, 18)
    nrm = lambda kk, s, sc=1.0: sc * jax.random.normal(kk, s, jnp.float32)
    uni = lambda kk, s: jax.random.uniform(kk, s, jnp.float32, 0.5, 1.5)
    p = {
        'w1': nrm(ks[0], (cmid, cin, 1, k), wscale), 'b1': nrm(ks[1], (cmid,), 0.1),
        'g1': 1.0 + nrm(ks[2], (cmid,), 0.1), 'beta1': nrm(ks[3], (cmid,), 0.1),
        'm1': nrm(ks[4], (cmid,), 0.1), 'v1': uni(ks[5], (cmid,)),
        'w2': nrm(ks[6], (cout, cmid, 1, k), wscale), 'b2': nrm(ks[7], (cout,), 0.1),
        'g2': 1.0 + nrm(ks[8], (cout,), 0.1), 'beta2': nrm(ks[9], (cout,), 0.1),
        'm2': nrm(ks[10], (cout,), 0.1), 'v2': uni(ks[11], (cout,)),
    }
    if resample:
        p.update({
            'wr': nrm(ks[12], (cout, cin, 1, 1), wscale), 'br': nrm(ks[13], (cout,), 0.1),
            'gr': 1.0 + nrm(ks[14], (cout,), 0.1), 'betar': nrm(ks[15], (cout,), 0.1),
            'mr': nrm(ks[16], (cout,), 0.1), 'vr': uni(ks[17], (cout,)),
        })
    else:
        p['wr'] = None
    return p


if __name__ == "__main__":
    # Two chained temporal residual blocks (as _generateResidualBlocks stacks them):
    #   block A: 8 -> (16, 16)   resampleInput active (1x1 conv + BN residual)
    #   block B: 16 -> (16, 16)  identity residual (no resample matmul)
    N, H, W = 2, 16, 16
    K, PAD = 3, 1
    key = jax.random.PRNGKey(0)
    kx, ka, kb = jax.random.split(key, 3)

    x = jax.random.normal(kx, (N, 8, H, W), jnp.float32)
    params_a = _make_block_params(ka, cin=8, cmid=16, cout=16, k=K, resample=True)
    params_b = _make_block_params(kb, cin=16, cmid=16, cout=16, k=K, resample=False)

    out_a = jax.block_until_ready(temporal_residual_block(x, params_a, pad=PAD))
    out_b = jax.block_until_ready(temporal_residual_block(out_a, params_b, pad=PAD))

    # Per-block correctness vs plain-JAX f32/HIGHEST reference.  Tolerance is
    # loosened slightly because the kernel uses bf16 MXU operands with f32
    # accumulation (as recommended by the perf review).
    ref_a = jax.block_until_ready(reference_forward(x, params_a, pad=PAD))
    np.testing.assert_allclose(np.asarray(out_a), np.asarray(ref_a),
                               rtol=5e-2, atol=5e-2)
    ref_b = jax.block_until_ready(reference_forward(out_a, params_b, pad=PAD))
    np.testing.assert_allclose(np.asarray(out_b), np.asarray(ref_b),
                               rtol=5e-2, atol=5e-2)

    print("KERNEL_OK")
</pallas_src>

<mosaic_0001>
module attributes {stable_mosaic.version = 11 : i64} {
  func.func @kernel(%arg0: i32, %arg1: memref<16x144xbf16, #tpu.memory_space<vmem>>, %arg2: memref<144x512xbf16, #tpu.memory_space<vmem>>, %arg3: memref<256x256xbf16, #tpu.memory_space<vmem>>, %arg4: memref<2x256xf32, #tpu.memory_space<vmem>>, %arg5: memref<16x256xf32, #tpu.memory_space<vmem>>) attributes {dimension_semantics = [#tpu.dimension_semantics<parallel>], iteration_bounds = array<i64: 2>, scalar_prefetch = 0 : i64, scratch_operands = 0 : i64, tpu.core_type = #tpu.core_type<tc>, window_params = [{transform_indices = @transform_0, window_bounds = array<i64: 16, 144>}, {pipeline_mode = #tpu.pipeline_mode<synchronous>, transform_indices = @transform_1, window_bounds = array<i64: 144, 512>}, {pipeline_mode = #tpu.pipeline_mode<synchronous>, transform_indices = @transform_2, window_bounds = array<i64: 256, 256>}, {pipeline_mode = #tpu.pipeline_mode<synchronous>, transform_indices = @transform_3, window_bounds = array<i64: 2, 256>}, {transform_indices = @transform_4, window_bounds = array<i64: 16, 256>}]} {
    %c0 = arith.constant 0 : index
    %c0_0 = arith.constant 0 : index
    %0 = vector.load %arg1[%c0, %c0_0] : memref<16x144xbf16, #tpu.memory_space<vmem>>, vector<16x144xbf16>
    %c0_1 = arith.constant 0 : index
    %c0_2 = arith.constant 0 : index
    %1 = vector.load %arg4[%c0_1, %c0_2] : memref<2x256xf32, #tpu.memory_space<vmem>>, vector<2x256xf32>
    %c0_3 = arith.constant 0 : index
    %c0_4 = arith.constant 0 : index
    %2 = vector.load %arg2[%c0_3, %c0_4] : memref<144x512xbf16, #tpu.memory_space<vmem>>, vector<144x512xbf16>
    %cst = arith.constant dense<0.000000e+00> : vector<16x512xf32>
    %3 = tpu.matmul %0, %2, %cst {dimension_numbers = #tpu.dot_dimension_numbers<[1], [0], [0], [1], [0, 0, 1, 1], [], []>} : vector<16x144xbf16>, vector<144x512xbf16>, vector<16x512xf32> -> vector<16x512xf32>
    %4 = vector.extract_strided_slice %3 {offsets = [0, 0], sizes = [16, 256], strides = [1, 1]} : vector<16x512xf32> to vector<16x256xf32>
    %5 = vector.extract_strided_slice %1 {offsets = [0, 0], sizes = [1, 256], strides = [1, 1]} : vector<2x256xf32> to vector<1x256xf32>
    %6 = vector.broadcast %5 : vector<1x256xf32> to vector<16x256xf32>
    %7 = arith.addf %4, %6 : vector<16x256xf32>
    %cst_5 = arith.constant 0.000000e+00 : f32
    %8 = vector.broadcast %cst_5 : f32 to vector<16x256xf32>
    %9 = arith.maximumf %7, %8 : vector<16x256xf32>
    %10 = arith.truncf %9 : vector<16x256xf32> to vector<16x256xbf16>
    %11 = vector.extract_strided_slice %3 {offsets = [0, 256], sizes = [16, 256], strides = [1, 1]} : vector<16x512xf32> to vector<16x256xf32>
    %c0_6 = arith.constant 0 : index
    %c0_7 = arith.constant 0 : index
    %12 = vector.load %arg3[%c0_6, %c0_7] : memref<256x256xbf16, #tpu.memory_space<vmem>>, vector<256x256xbf16>
    %cst_8 = arith.constant dense<0.000000e+00> : vector<16x256xf32>
    %13 = tpu.matmul %10, %12, %cst_8 {dimension_numbers = #tpu.dot_dimension_numbers<[1], [0], [0], [1], [0, 0, 1, 1], [], []>} : vector<16x256xbf16>, vector<256x256xbf16>, vector<16x256xf32> -> vector<16x256xf32>
    %14 = arith.addf %11, %13 : vector<16x256xf32>
    %15 = vector.extract_strided_slice %1 {offsets = [1, 0], sizes = [1, 256], strides = [1, 1]} : vector<2x256xf32> to vector<1x256xf32>
    %16 = vector.broadcast %15 : vector<1x256xf32> to vector<16x256xf32>
    %17 = arith.addf %14, %16 : vector<16x256xf32>
    %cst_9 = arith.constant 0.000000e+00 : f32
    %18 = vector.broadcast %cst_9 : f32 to vector<16x256xf32>
    %19 = arith.maximumf %17, %18 : vector<16x256xf32>
    %c0_10 = arith.constant 0 : index
    %c0_11 = arith.constant 0 : index
    %20 = vector.load %arg5[%c0_10, %c0_11] : memref<16x256xf32, #tpu.memory_space<vmem>>, vector<16x256xf32>
    tpu.vector_store %arg5[%c0_10, %c0_11], %19 {strides = array<i32>} : memref<16x256xf32, #tpu.memory_space<vmem>>, vector<16x256xf32>,
    return
  }
  func.func @transform_0(%arg0: i32) -> (i32, i32) {
    %c0_i32 = arith.constant 0 : i32
    %c0_i32_0 = arith.constant 0 : i32
    return %arg0, %c0_i32 : i32, i32
  }
  func.func @transform_1(%arg0: i32) -> (i32, i32) {
    %c0_i32 = arith.constant 0 : i32
    %c0_i32_0 = arith.constant 0 : i32
    %c0_i32_1 = arith.constant 0 : i32
    return %c0_i32, %c0_i32_0 : i32, i32
  }
  func.func @transform_2(%arg0: i32) -> (i32, i32) {
    %c0_i32 = arith.constant 0 : i32
    %c0_i32_0 = arith.constant 0 : i32
    %c0_i32_1 = arith.constant 0 : i32
    return %c0_i32, %c0_i32_0 : i32, i32
  }
  func.func @transform_3(%arg0: i32) -> (i32, i32) {
    %c0_i32 = arith.constant 0 : i32
    %c0_i32_0 = arith.constant 0 : i32
    %c0_i32_1 = arith.constant 0 : i32
    return %c0_i32, %c0_i32_0 : i32, i32
  }
  func.func @transform_4(%arg0: i32) -> (i32, i32) {
    %c0_i32 = arith.constant 0 : i32
    %c0_i32_0 = arith.constant 0 : i32
    return %arg0, %c0_i32 : i32, i32
  }
}

</mosaic_0001>

<llo_original>
// kernel: tpu_custom_call.1
$region0: #{tpu_custom_call.1}
  #allocation0 [shape = 'u32[]', space=smem, size = 0x4, offset = 0x4, fixed_abs, tag = 'smem constant byte address 0x4 - core index']
  #allocation1 [shape = 'u32[144,128]{1,0:T(1,128)}', space=vmem, size = 0x12000, scoped, tag = 'internal scratch']
  %s0 = inlined_call_operand.hbm [shape: bf16[32,144], index: 0, kind: input, shape index: {}]
  %s1 = inlined_call_operand.hbm [shape: bf16[144,512], index: 1, kind: input, shape index: {}]
  %s2 = inlined_call_operand.hbm [shape: bf16[256,256], index: 2, kind: input, shape index: {}]
  %s3 = inlined_call_operand.vmem [shape: f32[2,256], index: 3, kind: input, shape index: {}]
  %s4 = inlined_call_operand.hbm [shape: f32[32,256], index: 4, kind: output, shape index: {}]
  %s5 = sld [smem:[#allocation0]]
  $region61: #{tpu_custom_call.1} parent=0
    _
  %s7 = ssub.s32 1, %s5
  %s8 = scalar_select 0, %s7, %s5
  $region1: #{tpu_custom_call.1} parent=0
    #allocation2 [shape = 'u8[16384]{0}', space=vmem, size = 0x4000, scoped, tag = 'input window, operand 0']
    #allocation3 [shape = 's32[2]{0}', space=sflag, size = 0x8, scoped, tag = 'scoped memory for tpu_custom_call.1']
    #allocation4 [shape = 's32[2]{0}', space=sflag, size = 0x8, scoped, tag = 'scoped memory for tpu_custom_call.1']
    #allocation5 [shape = 'u8[147456]{0}', space=vmem, size = 0x24000, scoped, tag = 'input window, operand 1, single buffered']
    #allocation6 [shape = 's32[1]{0}', space=sflag, size = 0x4, scoped, tag = 'scoped memory for tpu_custom_call.1']
    #allocation7 [shape = 'u8[131072]{0}', space=vmem, size = 0x20000, scoped, tag = 'input window, operand 2, single buffered']
    #allocation8 [shape = 'u8[32768]{0}', space=vmem, size = 0x8000, scoped, tag = 'output window, operand 0']
    %9 = vsyncpa [#allocation3], 0
    %s10 = scalar_lea.sflag [#allocation3], 1
    %11 = vsyncpa %s10, 0
    %12 = vsyncpa [#allocation6], 0
    %13 = vsyncpa [#allocation4], 0
    %s14 = scalar_lea.sflag [#allocation4], 1
    %15 = vsyncpa %s14, 0
    loop: start=0, step=1, limit=4
    $region2: #{tpu_custom_call.1} parent=1 // loop_pre_header
      _
    $region3: #{tpu_custom_call.1} parent=1 // loop_header
      %s17 = sphi 0, %s21
      %p18 = scmp.ge.s32.totalorder %s17, 4
      %s27 = sphi 0, %s29
      %s30 = sphi 0, %s27
      %s31 = sphi 0, %s30
      %s47 = sphi 0, %s31
      %s51 = sphi 0, %s51
      %s53 = sphi 0, %s51
      %s54 = sphi 0, %s53
      %s68 = sphi 0, %s54
      %s72 = sphi 0, %s72
      %s74 = sphi 0, %s72
      %s75 = sphi 0, %s74
      %s89 = sphi 0, %s75
      %s93 = sphi 0, %s93
      %s95 = sphi 0, %s93
      %s96 = sphi 0, %s95
      %s110 = sphi 0, %s96
      %s116 = sphi 0, %s118
      %s119 = sphi 0, %s116
      %s120 = sphi 0, %s119
      %s136 = sphi 0, %s120
    $region4: #{tpu_custom_call.1} parent=1 // loop_header_branch
      %20 = sbr.rel (%p18) target = $region8
    $region5: #{tpu_custom_call.1} parent=1 // loop_body
      %s22 = ssub.s32 %s17, 1
      %s23 = ssub.s32 %s17, 2
      %s24 = sadd.s32 %s17, 1
      %s25 = ssub.s32 %s17, %s24
      %p26 = scmp.eq.s32.totalorder %s25, 0
      %s28 = sadd.s32 %s27, 1
      %s29 = scalar_select %p26, %s27, %s28
      %p32 = pneg %p26
      %p33 = scmp.eq.s32.totalorder %s17, 1
      %p34 = por %p32, %p33
      %p35 = scmp.ne.s32.totalorder %s27, %s30
      %p36 = scmp.eq.s32.totalorder %s17, 0
      %p37 = por %p35, %p36
      %p38 = scmp.ne.s32.totalorder %s27, %s30
      %p39 = scmp.eq.s32.totalorder %s22, 1
      %p40 = por %p38, %p39
      %p41 = scmp.ne.s32.totalorder %s30, %s31
      %p42 = scmp.eq.s32.totalorder %s22, 0
      %p43 = por %p41, %p42
      %p44 = scmp.ne.s32.totalorder %s30, %s31
      %p45 = scmp.eq.s32.totalorder %s23, 1
      %p46 = por %p44, %p45
      %p48 = scmp.ne.s32.totalorder %s31, %s47
      %p49 = scmp.eq.s32.totalorder %s23, 0
      %p50 = por %p48, %p49
      %s52 = sadd.s32 %s51, 1
      %p55 = scmp.eq.s32.totalorder %s17, 1
      %p56 = scmp.ne.s32.totalorder %s51, %s53
      %p57 = scmp.eq.s32.totalorder %s17, 0
      %p58 = por %p56, %p57
      %p59 = scmp.ne.s32.totalorder %s51, %s53
      %p60 = scmp.eq.s32.totalorder %s22, 1
      %p61 = por %p59, %p60
      %p62 = scmp.ne.s32.totalorder %s53, %s54
      %p63 = scmp.eq.s32.totalorder %s22, 0
      %p64 = por %p62, %p63
      %p65 = scmp.ne.s32.totalorder %s53, %s54
      %p66 = scmp.eq.s32.totalorder %s23, 1
      %p67 = por %p65, %p66
      %p69 = scmp.ne.s32.totalorder %s54, %s68
      %p70 = scmp.eq.s32.totalorder %s23, 0
      %p71 = por %p69, %p70
      %s73 = sadd.s32 %s72, 1
      %p76 = scmp.eq.s32.totalorder %s17, 1
      %p77 = scmp.ne.s32.totalorder %s72, %s74
      %p78 = scmp.eq.s32.totalorder %s17, 0
      %p79 = por %p77, %p78
      %p80 = scmp.ne.s32.totalorder %s72, %s74
      %p81 = scmp.eq.s32.totalorder %s22, 1
      %p82 = por %p80, %p81
      %p83 = scmp.ne.s32.totalorder %s74, %s75
      %p84 = scmp.eq.s32.totalorder %s22, 0
      %p85 = por %p83, %p84
      %p86 = scmp.ne.s32.totalorder %s74, %s75
      %p87 = scmp.eq.s32.totalorder %s23, 1
      %p88 = por %p86, %p87
      %p90 = scmp.ne.s32.totalorder %s75, %s89
      %p91 = scmp.eq.s32.totalorder %s23, 0
      %p92 = por %p90, %p91
      %s94 = sadd.s32 %s93, 1
      %p97 = scmp.eq.s32.totalorder %s17, 1
      %p98 = scmp.ne.s32.totalorder %s93, %s95
      %p99 = scmp.eq.s32.totalorder %s17, 0
      %p100 = por %p98, %p99
      %p101 = scmp.ne.s32.totalorder %s93, %s95
      %p102 = scmp.eq.s32.totalorder %s22, 1
      %p103 = por %p101, %p102
      %p104 = scmp.ne.s32.totalorder %s95, %s96
      %p105 = scmp.eq.s32.totalorder %s22, 0
      %p106 = por %p104, %p105
      %p107 = scmp.ne.s32.totalorder %s95, %s96
      %p108 = scmp.eq.s32.totalorder %s23, 1
      %p109 = por %p107, %p108
      %p111 = scmp.ne.s32.totalorder %s96, %s110
      %p112 = scmp.eq.s32.totalorder %s23, 0
      %p113 = por %p111, %p112
      %s114 = ssub.s32 %s17, %s24
      %p115 = scmp.eq.s32.totalorder %s114, 0
      %s117 = sadd.s32 %s116, 1
      %s118 = scalar_select %p115, %s116, %s117
      %p121 = pneg %p115
      %p122 = scmp.eq.s32.totalorder %s17, 1
      %p123 = por %p121, %p122
      %p124 = scmp.ne.s32.totalorder %s116, %s119
      %p125 = scmp.eq.s32.totalorder %s17, 0
      %p126 = por %p124, %p125
      %p127 = scmp.ne.s32.totalorder %s116, %s119
      %p128 = scmp.eq.s32.totalorder %s22, 1
      %p129 = por %p127, %p128
      %p130 = scmp.ne.s32.totalorder %s119, %s120
      %p131 = scmp.eq.s32.totalorder %s22, 0
      %p132 = por %p130, %p131
      %p133 = scmp.ne.s32.totalorder %s119, %s120
      %p134 = scmp.eq.s32.totalorder %s23, 1
      %p135 = por %p133, %p134
      %p137 = scmp.ne.s32.totalorder %s120, %s136
      %p138 = scmp.eq.s32.totalorder %s23, 0
      %p139 = por %p137, %p138
      %p140 = scmp.le.s32.totalorder 1, %s17
      %p141 = scmp.lt.s32.totalorder %s17, 3
      %p142 = pnand %p140, %p141
      %p143 = pneg %p142
      // Predicated region
      $region9: #{tpu_custom_call.1} parent=5 // pred_check
        _
      $region10: #{tpu_custom_call.1} parent=5 // pred_check_branch
        %145 = sbr.rel (%p142) target = $region12
      $region11: #{tpu_custom_call.1} parent=5 // pred_region
        %s146 = ssub.s32 %s17, 1
        // Predicated region
        $region13: #{tpu_custom_call.1} parent=11 // pred_check
          %p147 = pneg %p64
        $region14: #{tpu_custom_call.1} parent=11 // pred_check_branch
          %149 = sbr.rel (%p147) target = $region16
        $region15: #{tpu_custom_call.1} parent=11 // pred_region
          %s151 = ssub.s32 4608, 4608
          %152 = vsyncadd [#allocation6], %s151
          %s153 = sshll.u32 [#allocation5], 4
          %s154 = int_to_ptr.vmem [resolvable:$true] %s153
          %159 = dma.hbm_to_vmem [thread:$0]  %s1, 4608, %s154, [#allocation6], 256, 256, 16
        $region16: #{tpu_custom_call.1} parent=11 // pred_fallthru
          _
        // Predicated region
        $region17: #{tpu_custom_call.1} parent=11 // pred_check
          %p160 = pneg %p85
        $region18: #{tpu_custom_call.1} parent=11 // pred_check_branch
          %162 = sbr.rel (%p160) target = $region20
        $region19: #{tpu_custom_call.1} parent=11 // pred_region
          %s164 = ssub.s32 4096, 4096
          %165 = vsyncadd [#allocation6], %s164
          %s166 = sshll.u32 [#allocation7], 4
          %s167 = int_to_ptr.vmem [resolvable:$true] %s166
          %172 = dma.hbm_to_vmem [thread:$0]  %s2, 4096, %s167, [#allocation6], 128, 128, 8
        $region20: #{tpu_custom_call.1} parent=11 // pred_fallthru
          _
        // Predicated region
        $region21: #{tpu_custom_call.1} parent=11 // pred_check
          %p173 = pneg %p106
        $region22: #{tpu_custom_call.1} parent=11 // pred_check_branch
          %175 = sbr.rel (%p173) target = $region24
        $region23: #{tpu_custom_call.1} parent=11 // pred_region
          _
        $region24: #{tpu_custom_call.1} parent=11 // pred_fallthru
          _
      $region12: #{tpu_custom_call.1} parent=5 // pred_fallthru
        _
      %p176 = scmp.lt.s32.totalorder %s17, 2
      // Predicated region
      $region25: #{tpu_custom_call.1} parent=5 // pred_check
        %p177 = pneg %p176
      $region26: #{tpu_custom_call.1} parent=5 // pred_check_branch
        %179 = sbr.rel (%p177) target = $region28
      $region27: #{tpu_custom_call.1} parent=5 // pred_region
        // Predicated region
        $region29: #{tpu_custom_call.1} parent=27 // pred_check
          %p180 = pneg %p37
        $region30: #{tpu_custom_call.1} parent=27 // pred_check_branch
          %182 = sbr.rel (%p180) target = $region32
        $region31: #{tpu_custom_call.1} parent=27 // pred_region
          %s183 = sand.u32 %s27, 1
          %s184 = scalar_lea.sflag [#allocation3], %s183
          %s185 = sand.u32 %s27, 1
          %s186 = smul.addr %s185, 16
          %s187 = scalar_lea.vmem [#allocation2], %s186
          %s188 = smul.u32 2, %s17
          %s190 = ssub.s32 256, 256
          %191 = vsyncadd %s184, %s190
          %s192 = smul.addr %s188, 2
          %s193 = smul.addr %s192, 64
          %s194 = scalar_lea.hbm %s0, %s193
          %s195 = sshll.u32 %s187, 4
          %s196 = int_to_ptr.vmem [resolvable:$true] %s195
          %201 = dma.hbm_to_vmem [thread:$0]  %s194, 256, %s196, %s184, 128, 128, 8
        $region32: #{tpu_custom_call.1} parent=27 // pred_fallthru
          _
      $region28: #{tpu_custom_call.1} parent=5 // pred_fallthru
        _
      %p202 = scmp.le.s32.totalorder 1, %s17
      %p203 = scmp.lt.s32.totalorder %s17, 3
      %p204 = pnand %p202, %p203
      %p205 = pneg %p204
      // Predicated region
      $region33: #{tpu_custom_call.1} parent=5 // pred_check
        _
      $region34: #{tpu_custom_call.1} parent=5 // pred_check_branch
        %207 = sbr.rel (%p204) target = $region36
      $region35: #{tpu_custom_call.1} parent=5 // pred_region
        %s208 = ssub.s32 %s17, 1
        %s209 = sand.u32 %s30, 1
        %s210 = scalar_lea.sflag [#allocation3], %s209
        %s211 = sand.u32 %s30, 1
        %s212 = smul.addr %s211, 16
        %s213 = scalar_lea.vmem [#allocation2], %s212
        // Predicated region
        $region37: #{tpu_custom_call.1} parent=35 // pred_check
          %p214 = pneg %p43
        $region38: #{tpu_custom_call.1} parent=35 // pred_check_branch
          %216 = sbr.rel (%p214) target = $region40
        $region39: #{tpu_custom_call.1} parent=35 // pred_region
          %217 = dma.done %s210, 256
        $region40: #{tpu_custom_call.1} parent=35 // pred_fallthru
          _
        // Predicated region
        $region41: #{tpu_custom_call.1} parent=35 // pred_check
          %p218 = pneg %p64
        $region42: #{tpu_custom_call.1} parent=35 // pred_check_branch
          %220 = sbr.rel (%p218) target = $region44
        $region43: #{tpu_custom_call.1} parent=35 // pred_region
          %221 = dma.done [#allocation6], 4608
        $region44: #{tpu_custom_call.1} parent=35 // pred_fallthru
          _
        // Predicated region
        $region45: #{tpu_custom_call.1} parent=35 // pred_check
          %p222 = pneg %p85
        $region46: #{tpu_custom_call.1} parent=35 // pred_check_branch
          %224 = sbr.rel (%p222) target = $region48
        $region47: #{tpu_custom_call.1} parent=35 // pred_region
          %225 = dma.done [#allocation6], 4096
        $region48: #{tpu_custom_call.1} parent=35 // pred_fallthru
          _
        %s226 = sand.u32 %s30, 1
        %s227 = scalar_lea.sflag [#allocation3], %s226
        %s228 = sand.u32 %s30, 1
        %s229 = smul.addr %s228, 16
        %s230 = scalar_lea.vmem [#allocation2], %s229
        %p231 = pneg %p43
        %p232 = pneg %p40
        %p233 = pneg %p64
        %p234 = pneg %p61
        %p235 = pneg %p85
        %p236 = pneg %p82
        %p237 = pneg %p106
        %p238 = pneg %p103
        %p239 = pneg %p132
        %p240 = pneg %p129
        %s241 = sand.u32 %s119, 1
        %s242 = scalar_lea.sflag [#allocation4], %s241
        %s243 = sand.u32 %s119, 1
        %s244 = smul.addr %s243, 32
        %s245 = scalar_lea.vmem [#allocation8], %s244
        %s246 = smul.u32 2, %s22
        %s247 = smul.u32 2, %s22
        %v249 = vld [vmem:[%s213] sm:$0xff]
        %v250 = vld [vmem:[%s213 + $0x8] sm:$0xff]
        %v251 = vld [vmem:[%s3] sm:$0xf]
        %v252 = vld [vmem:[#allocation5] sm:$0xff]
        %v253 = vld [vmem:[#allocation5 + $0x8] sm:$0xff]
        %v254 = vld [vmem:[#allocation5 + $0x10] sm:$0xff]
        %v255 = vld [vmem:[#allocation5 + $0x18] sm:$0xff]
        %v256 = vld [vmem:[#allocation5 + $0x20] sm:$0xff]
        %v257 = vld [vmem:[#allocation5 + $0x28] sm:$0xff]
        %v258 = vld [vmem:[#allocation5 + $0x30] sm:$0xff]
        %v259 = vld [vmem:[#allocation5 + $0x38] sm:$0xff]
        %v260 = vld [vmem:[#allocation5 + $0x40] sm:$0xff]
        %v261 = vld [vmem:[#allocation5 + $0x48] sm:$0xff]
        %v262 = vld [vmem:[#allocation5 + $0x50] sm:$0xff]
        %v263 = vld [vmem:[#allocation5 + $0x58] sm:$0xff]
        %v264 = vld [vmem:[#allocation5 + $0x60] sm:$0xff]
        %v265 = vld [vmem:[#allocation5 + $0x68] sm:$0xff]
        %v266 = vld [vmem:[#allocation5 + $0x70] sm:$0xff]
        %v267 = vld [vmem:[#allocation5 + $0x78] sm:$0xff]
        %v268 = vld [vmem:[#allocation5 + $0x80] sm:$0xff]
        %v269 = vld [vmem:[#allocation5 + $0x88] sm:$0xff]
        %v270 = vld [vmem:[#allocation5 + $0x90] sm:$0xff]
        %v271 = vld [vmem:[#allocation5 + $0x98] sm:$0xff]
        %v272 = vld [vmem:[#allocation5 + $0xa0] sm:$0xff]
        %v273 = vld [vmem:[#allocation5 + $0xa8] sm:$0xff]
        %v274 = vld [vmem:[#allocation5 + $0xb0] sm:$0xff]
        %v275 = vld [vmem:[#allocation5 + $0xb8] sm:$0xff]
        %v276 = vld [vmem:[#allocation5 + $0xc0] sm:$0xff]
        %v277 = vld [vmem:[#allocation5 + $0xc8] sm:$0xff]
        %v278 = vld [vmem:[#allocation5 + $0xd0] sm:$0xff]
        %v279 = vld [vmem:[#allocation5 + $0xd8] sm:$0xff]
        %v280 = vld [vmem:[#allocation5 + $0xe0] sm:$0xff]
        %v281 = vld [vmem:[#allocation5 + $0xe8] sm:$0xff]
        %v282 = vld [vmem:[#allocation5 + $0xf0] sm:$0xff]
        %v283 = vld [vmem:[#allocation5 + $0xf8] sm:$0xff]
        %v284 = vld [vmem:[#allocation5 + $0x100] sm:$0xff]
        %v285 = vld [vmem:[#allocation5 + $0x108] sm:$0xff]
        %v286 = vld [vmem:[#allocation5 + $0x110] sm:$0xff]
        %v287 = vld [vmem:[#allocation5 + $0x118] sm:$0xff]
        %v290 = vunpack.c.l.b16 %v249
        %v291 = vunpack.c.h.b16 %v249
        %v292 = vunpack.c.l.b16 %v250
        %v293 = vunpack.c.h.b16 %v250
        %v294 = vpack.c.b16 %v292, %v290
        %v295 = vpack.c.b16 %v293, %v291
        %v333 = vunpack.c.l.b16 %v252
        %v334 = vunpack.c.h.b16 %v252
        %v335 = vunpack.c.l.b16 %v253
        %v336 = vunpack.c.h.b16 %v253
        %v337 = vunpack.c.l.b16 %v254
        %v338 = vunpack.c.h.b16 %v254
        %v339 = vunpack.c.l.b16 %v255
        %v340 = vunpack.c.h.b16 %v255
        %v341 = vunpack.c.l.b16 %v256
        %v342 = vunpack.c.h.b16 %v256
        %v343 = vunpack.c.l.b16 %v257
        %v344 = vunpack.c.h.b16 %v257
        %v345 = vunpack.c.l.b16 %v258
        %v346 = vunpack.c.h.b16 %v258
        %v347 = vunpack.c.l.b16 %v259
        %v348 = vunpack.c.h.b16 %v259
        %v349 = vunpack.c.l.b16 %v260
        %v350 = vunpack.c.h.b16 %v260
        %v351 = vunpack.c.l.b16 %v261
        %v352 = vunpack.c.h.b16 %v261
        %v353 = vunpack.c.l.b16 %v262
        %v354 = vunpack.c.h.b16 %v262
        %v355 = vunpack.c.l.b16 %v263
        %v356 = vunpack.c.h.b16 %v263
        %v357 = vunpack.c.l.b16 %v264
        %v358 = vunpack.c.h.b16 %v264
        %v359 = vunpack.c.l.b16 %v265
        %v360 = vunpack.c.h.b16 %v265
        %v361 = vunpack.c.l.b16 %v266
        %v362 = vunpack.c.h.b16 %v266
        %v363 = vunpack.c.l.b16 %v267
        %v364 = vunpack.c.h.b16 %v267
        %v365 = vunpack.c.l.b16 %v268
        %v366 = vunpack.c.h.b16 %v268
        %v367 = vunpack.c.l.b16 %v269
        %v368 = vunpack.c.h.b16 %v269
        %v369 = vunpack.c.l.b16 %v270
        %v370 = vunpack.c.h.b16 %v270
        %v371 = vunpack.c.l.b16 %v271
        %v372 = vunpack.c.h.b16 %v271
        %v373 = vunpack.c.l.b16 %v272
        %v374 = vunpack.c.h.b16 %v272
        %v375 = vunpack.c.l.b16 %v273
        %v376 = vunpack.c.h.b16 %v273
        %v377 = vunpack.c.l.b16 %v274
        %v378 = vunpack.c.h.b16 %v274
        %v379 = vunpack.c.l.b16 %v275
        %v380 = vunpack.c.h.b16 %v275
        %v381 = vunpack.c.l.b16 %v276
        %v382 = vunpack.c.h.b16 %v276
        %v383 = vunpack.c.l.b16 %v277
        %v384 = vunpack.c.h.b16 %v277
        %v385 = vunpack.c.l.b16 %v278
        %v386 = vunpack.c.h.b16 %v278
        %v387 = vunpack.c.l.b16 %v279
        %v388 = vunpack.c.h.b16 %v279
        %v389 = vunpack.c.l.b16 %v280
        %v390 = vunpack.c.h.b16 %v280
        %v391 = vunpack.c.l.b16 %v281
        %v392 = vunpack.c.h.b16 %v281
        %v393 = vunpack.c.l.b16 %v282
        %v394 = vunpack.c.h.b16 %v282
        %v395 = vunpack.c.l.b16 %v283
        %v396 = vunpack.c.h.b16 %v283
        %v397 = vunpack.c.l.b16 %v284
        %v398 = vunpack.c.h.b16 %v284
        %v399 = vunpack.c.l.b16 %v285
        %v400 = vunpack.c.h.b16 %v285
        %v401 = vunpack.c.l.b16 %v286
        %v402 = vunpack.c.h.b16 %v286
        %v403 = vunpack.c.l.b16 %v287
        %v404 = vunpack.c.h.b16 %v287
        %v405 = vpack.c.b16 %v337, %v333
        %v406 = vpack.c.b16 %v338, %v334
        %v407 = vpack.c.b16 %v339, %v335
        %v408 = vpack.c.b16 %v340, %v336
        %v409 = vpack.c.b16 %v345, %v341
        %v410 = vpack.c.b16 %v346, %v342
        %v411 = vpack.c.b16 %v347, %v343
        %v412 = vpack.c.b16 %v348, %v344
        %v413 = vpack.c.b16 %v353, %v349
        %v414 = vpack.c.b16 %v354, %v350
        %v415 = vpack.c.b16 %v355, %v351
        %v416 = vpack.c.b16 %v356, %v352
        %v417 = vpack.c.b16 %v361, %v357
        %v418 = vpack.c.b16 %v362, %v358
        %v419 = vpack.c.b16 %v363, %v359
        %v420 = vpack.c.b16 %v364, %v360
        %v421 = vpack.c.b16 %v369, %v365
        %v422 = vpack.c.b16 %v370, %v366
        %v423 = vpack.c.b16 %v371, %v367
        %v424 = vpack.c.b16 %v372, %v368
        %v425 = vpack.c.b16 %v377, %v373
        %v426 = vpack.c.b16 %v378, %v374
        %v427 = vpack.c.b16 %v379, %v375
        %v428 = vpack.c.b16 %v380, %v376
        %v429 = vpack.c.b16 %v385, %v381
        %v430 = vpack.c.b16 %v386, %v382
        %v431 = vpack.c.b16 %v387, %v383
        %v432 = vpack.c.b16 %v388, %v384
        %v433 = vpack.c.b16 %v393, %v389
        %v434 = vpack.c.b16 %v394, %v390
        %v435 = vpack.c.b16 %v395, %v391
        %v436 = vpack.c.b16 %v396, %v392
        %v437 = vpack.c.b16 %v401, %v397
        %v438 = vpack.c.b16 %v402, %v398
        %v439 = vpack.c.b16 %v403, %v399
        %v440 = vpack.c.b16 %v404, %v400
        %vm477 = vcmask 130048
        %v479 = vsel %vm477, %v295, 0
        %481 = vmatprep.subr.bf16.mxu0 %v406
        %482 = vmatpush1.bf16.msra.mxu0 %v405
        %483 = vmatprep.subr.bf16.mxu0 %v410
        %484 = vmatpush1.bf16.msra.mxu0 %v409
        %485 = vmatprep.subr.bf16.mxu0 %v414
        %486 = vmatpush1.bf16.msra.mxu0 %v413
        %487 = vmatprep.subr.bf16.mxu0 %v418
        %488 = vmatpush1.bf16.msra.mxu0 %v417
        %489 = vmatprep.subr.bf16.mxu0 %v422
        %490 = vmatpush1.bf16.msra.mxu0 %v421
        %491 = vmatprep.subr.bf16.mxu0 %v426
        %492 = vmatpush1.bf16.msra.mxu0 %v425
        %493 = vmatprep.subr.bf16.mxu0 %v430
        %494 = vmatpush1.bf16.msra.mxu0 %v429
        %495 = vmatprep.subr.bf16.mxu0 %v434
        %496 = vmatpush1.bf16.msra.mxu0 %v433
        %497 = vmatprep.subr.bf16.mxu0 %v438
        %498 = vmatpush1.bf16.msra.mxu0 %v437
        %499 = vmatprep.subr.bf16.mxu0 0
        %500 = vmatpush1.bf16.msra.mxu0 0
        %501 = vmatprep.subr.bf16.mxu0 0
        %502 = vmatpush1.bf16.msra.mxu0 0
        %503 = vmatprep.subr.bf16.mxu0 0
        %504 = vmatpush1.bf16.msra.mxu0 0
        %505 = vmatprep.subr.bf16.mxu0 0
        %506 = vmatpush1.bf16.msra.mxu0 0
        %507 = vmatprep.subr.bf16.mxu0 0
        %508 = vmatpush1.bf16.msra.mxu0 0
        %509 = vmatprep.subr.bf16.mxu0 0
        %510 = vmatpush1.bf16.msra.mxu0 0
        %511 = vmatprep.subr.bf16.mxu0 0
        %512 = vmatpush1.bf16.msra.mxu0 0
        %513 = vmatprep.mubr.bf16.mxu0 %v479
        %514 = vmatmul.mubr.bf16.gmra.mrb[0].mxu0 %v294
        %v515 = vpop.f32.mrb[0].mxu0
        %v516 = vadd.f32 0.0, %v515
        %v517 = vpop.f32.mrb[0].mxu0
        %v518 = vadd.f32 0.0, %v517
        %v519 = vpop.f32.mrb[0].mxu0
        %v520 = vadd.f32 0.0, %v519
        %v521 = vpop.f32.mrb[0].mxu0
        %v522 = vadd.f32 0.0, %v521
        %523 = vdwg.mxu0
        %524 = vmatprep.subr.bf16.mxu0 %v408
        %525 = vmatpush1.bf16.msra.mxu0 %v407
        %526 = vmatprep.subr.bf16.mxu0 %v412
        %527 = vmatpush1.bf16.msra.mxu0 %v411
        %528 = vmatprep.subr.bf16.mxu0 %v416
        %529 = vmatpush1.bf16.msra.mxu0 %v415
        %530 = vmatprep.subr.bf16.mxu0 %v420
        %531 = vmatpush1.bf16.msra.mxu0 %v419
        %532 = vmatprep.subr.bf16.mxu0 %v424
        %533 = vmatpush1.bf16.msra.mxu0 %v423
        %534 = vmatprep.subr.bf16.mxu0 %v428
        %535 = vmatpush1.bf16.msra.mxu0 %v427
        %536 = vmatprep.subr.bf16.mxu0 %v432
        %537 = vmatpush1.bf16.msra.mxu0 %v431
        %538 = vmatprep.subr.bf16.mxu0 %v436
        %539 = vmatpush1.bf16.msra.mxu0 %v435
        %540 = vmatprep.subr.bf16.mxu0 %v440
        %541 = vmatpush1.bf16.msra.mxu0 %v439
        %542 = vmatprep.subr.bf16.mxu0 0
        %543 = vmatpush1.bf16.msra.mxu0 0
        %544 = vmatprep.subr.bf16.mxu0 0
        %545 = vmatpush1.bf16.msra.mxu0 0
        %546 = vmatprep.subr.bf16.mxu0 0
        %547 = vmatpush1.bf16.msra.mxu0 0
        %548 = vmatprep.subr.bf16.mxu0 0
        %549 = vmatpush1.bf16.msra.mxu0 0
        %550 = vmatprep.subr.bf16.mxu0 0
        %551 = vmatpush1.bf16.msra.mxu0 0
        %552 = vmatprep.subr.bf16.mxu0 0
        %553 = vmatpush1.bf16.msra.mxu0 0
        %554 = vmatprep.subr.bf16.mxu0 0
        %555 = vmatpush1.bf16.msra.mxu0 0
        %556 = vmatprep.mubr.bf16.mxu0 %v479
        %557 = vmatmul.mubr.bf16.gmra.mrb[0].mxu0 %v294
        %v558 = vpop.f32.mrb[0].mxu0
        %v559 = vadd.f32 0.0, %v558
        %v560 = vpop.f32.mrb[0].mxu0
        %v561 = vadd.f32 0.0, %v560
        %v562 = vpop.f32.mrb[0].mxu0
        %v563 = vadd.f32 0.0, %v562
        %v564 = vpop.f32.mrb[0].mxu0
        %v565 = vadd.f32 0.0, %v564
        %566 = vdwg.mxu0
        %v568 = vlaneseq
        %v569 = vshrl.u32 %v568, 7
        %v570 = vsub.s32 0, %v569
        %v571 = vrot.slane %v251, %v570
        %v572 = vlaneseq
        %v573 = vshrl.u32 %v572, 7
        %v574 = vsub.s32 2, %v573
        %v575 = vrot.slane %v251, %v574
        %v578 = vlaneseq
        %v579 = vshrl.u32 %v578, 7
        %v580 = vsub.s32 0, %v579
        %v581 = vrot.slane %v571, %v580
        %v582 = vlaneseq
        %v583 = vshrl.u32 %v582, 7
        %v584 = vsub.s32 0, %v583
        %v585 = vrot.slane %v575, %v584
        %v586 = vadd.f32 %v516, %v581
        %v587 = vadd.f32 %v518, %v585
        %v588 = vadd.f32 %v520, %v581
        %v589 = vadd.f32 %v522, %v585
        %v590 = vmax.f32 %v586, 0.0
        %v591 = vmax.f32 %v587, 0.0
        %v592 = vmax.f32 %v588, 0.0
        %v593 = vmax.f32 %v589, 0.0
        %v594 = vpack.c.bf16 %v592, %v590
        %v595 = vpack.c.bf16 %v593, %v591
        %v596 = vld [vmem:[#allocation7] sm:$0xff]
        %v597 = vld [vmem:[#allocation7 + $0x8] sm:$0xff]
        %v598 = vld [vmem:[#allocation7 + $0x10] sm:$0xff]
        %v599 = vld [vmem:[#allocation7 + $0x18] sm:$0xff]
        %v600 = vld [vmem:[#allocation7 + $0x20] sm:$0xff]
        %v601 = vld [vmem:[#allocation7 + $0x28] sm:$0xff]
        %v602 = vld [vmem:[#allocation7 + $0x30] sm:$0xff]
        %v603 = vld [vmem:[#allocation7 + $0x38] sm:$0xff]
        %v604 = vld [vmem:[#allocation7 + $0x40] sm:$0xff]
        %v605 = vld [vmem:[#allocation7 + $0x48] sm:$0xff]
        %v606 = vld [vmem:[#allocation7 + $0x50] sm:$0xff]
        %v607 = vld [vmem:[#allocation7 + $0x58] sm:$0xff]
        %v608 = vld [vmem:[#allocation7 + $0x60] sm:$0xff]
        %v609 = vld [vmem:[#allocation7 + $0x68] sm:$0xff]
        %v610 = vld [vmem:[#allocation7 + $0x70] sm:$0xff]
        %v611 = vld [vmem:[#allocation7 + $0x78] sm:$0xff]
        %v612 = vld [vmem:[#allocation7 + $0x80] sm:$0xff]
        %v613 = vld [vmem:[#allocation7 + $0x88] sm:$0xff]
        %v614 = vld [vmem:[#allocation7 + $0x90] sm:$0xff]
        %v615 = vld [vmem:[#allocation7 + $0x98] sm:$0xff]
        %v616 = vld [vmem:[#allocation7 + $0xa0] sm:$0xff]
        %v617 = vld [vmem:[#allocation7 + $0xa8] sm:$0xff]
        %v618 = vld [vmem:[#allocation7 + $0xb0] sm:$0xff]
        %v619 = vld [vmem:[#allocation7 + $0xb8] sm:$0xff]
        %v620 = vld [vmem:[#allocation7 + $0xc0] sm:$0xff]
        %v621 = vld [vmem:[#allocation7 + $0xc8] sm:$0xff]
        %v622 = vld [vmem:[#allocation7 + $0xd0] sm:$0xff]
        %v623 = vld [vmem:[#allocation7 + $0xd8] sm:$0xff]
        %v624 = vld [vmem:[#allocation7 + $0xe0] sm:$0xff]
        %v625 = vld [vmem:[#allocation7 + $0xe8] sm:$0xff]
        %v626 = vld [vmem:[#allocation7 + $0xf0] sm:$0xff]
        %v627 = vld [vmem:[#allocation7 + $0xf8] sm:$0xff]
        %v660 = vunpack.c.l.b16 %v596
        %v661 = vunpack.c.h.b16 %v596
        %v662 = vunpack.c.l.b16 %v597
        %v663 = vunpack.c.h.b16 %v597
        %v664 = vunpack.c.l.b16 %v598
        %v665 = vunpack.c.h.b16 %v598
        %v666 = vunpack.c.l.b16 %v599
        %v667 = vunpack.c.h.b16 %v599
        %v668 = vunpack.c.l.b16 %v600
        %v669 = vunpack.c.h.b16 %v600
        %v670 = vunpack.c.l.b16 %v601
        %v671 = vunpack.c.h.b16 %v601
        %v672 = vunpack.c.l.b16 %v602
        %v673 = vunpack.c.h.b16 %v602
        %v674 = vunpack.c.l.b16 %v603
        %v675 = vunpack.c.h.b16 %v603
        %v676 = vunpack.c.l.b16 %v604
        %v677 = vunpack.c.h.b16 %v604
        %v678 = vunpack.c.l.b16 %v605
        %v679 = vunpack.c.h.b16 %v605
        %v680 = vunpack.c.l.b16 %v606
        %v681 = vunpack.c.h.b16 %v606
        %v682 = vunpack.c.l.b16 %v607
        %v683 = vunpack.c.h.b16 %v607
        %v684 = vunpack.c.l.b16 %v608
        %v685 = vunpack.c.h.b16 %v608
        %v686 = vunpack.c.l.b16 %v609
        %v687 = vunpack.c.h.b16 %v609
        %v688 = vunpack.c.l.b16 %v610
        %v689 = vunpack.c.h.b16 %v610
        %v690 = vunpack.c.l.b16 %v611
        %v691 = vunpack.c.h.b16 %v611
        %v692 = vunpack.c.l.b16 %v612
        %v693 = vunpack.c.h.b16 %v612
        %v694 = vunpack.c.l.b16 %v613
        %v695 = vunpack.c.h.b16 %v613
        %v696 = vunpack.c.l.b16 %v614
        %v697 = vunpack.c.h.b16 %v614
        %v698 = vunpack.c.l.b16 %v615
        %v699 = vunpack.c.h.b16 %v615
        %v700 = vunpack.c.l.b16 %v616
        %v701 = vunpack.c.h.b16 %v616
        %v702 = vunpack.c.l.b16 %v617
        %v703 = vunpack.c.h.b16 %v617
        %v704 = vunpack.c.l.b16 %v618
        %v705 = vunpack.c.h.b16 %v618
        %v706 = vunpack.c.l.b16 %v619
        %v707 = vunpack.c.h.b16 %v619
        %v708 = vunpack.c.l.b16 %v620
        %v709 = vunpack.c.h.b16 %v620
        %v710 = vunpack.c.l.b16 %v621
        %v711 = vunpack.c.h.b16 %v621
        %v712 = vunpack.c.l.b16 %v622
        %v713 = vunpack.c.h.b16 %v622
        %v714 = vunpack.c.l.b16 %v623
        %v715 = vunpack.c.h.b16 %v623
        %v716 = vunpack.c.l.b16 %v624
        %v717 = vunpack.c.h.b16 %v624
        %v718 = vunpack.c.l.b16 %v625
        %v719 = vunpack.c.h.b16 %v625
        %v720 = vunpack.c.l.b16 %v626
        %v721 = vunpack.c.h.b16 %v626
        %v722 = vunpack.c.l.b16 %v627
        %v723 = vunpack.c.h.b16 %v627
        %v724 = vpack.c.b16 %v662, %v660
        %v725 = vpack.c.b16 %v663, %v661
        %v726 = vpack.c.b16 %v666, %v664
        %v727 = vpack.c.b16 %v667, %v665
        %v728 = vpack.c.b16 %v670, %v668
        %v729 = vpack.c.b16 %v671, %v669
        %v730 = vpack.c.b16 %v674, %v672
        %v731 = vpack.c.b16 %v675, %v673
        %v732 = vpack.c.b16 %v678, %v676
        %v733 = vpack.c.b16 %v679, %v677
        %v734 = vpack.c.b16 %v682, %v680
        %v735 = vpack.c.b16 %v683, %v681
        %v736 = vpack.c.b16 %v686, %v684
        %v737 = vpack.c.b16 %v687, %v685
        %v738 = vpack.c.b16 %v690, %v688
        %v739 = vpack.c.b16 %v691, %v689
        %v740 = vpack.c.b16 %v694, %v692
        %v741 = vpack.c.b16 %v695, %v693
        %v742 = vpack.c.b16 %v698, %v696
        %v743 = vpack.c.b16 %v699, %v697
        %v744 = vpack.c.b16 %v702, %v700
        %v745 = vpack.c.b16 %v703, %v701
        %v746 = vpack.c.b16 %v706, %v704
        %v747 = vpack.c.b16 %v707, %v705
        %v748 = vpack.c.b16 %v710, %v708
        %v749 = vpack.c.b16 %v711, %v709
        %v750 = vpack.c.b16 %v714, %v712
        %v751 = vpack.c.b16 %v715, %v713
        %v752 = vpack.c.b16 %v718, %v716
        %v753 = vpack.c.b16 %v719, %v717
        %v754 = vpack.c.b16 %v722, %v720
        %v755 = vpack.c.b16 %v723, %v721
        %788 = vmatprep.subr.bf16.mxu0 %v725
        %789 = vmatpush1.bf16.msra.mxu0 %v724
        %790 = vmatprep.subr.bf16.mxu0 %v727
        %791 = vmatpush1.bf16.msra.mxu0 %v726
        %792 = vmatprep.subr.bf16.mxu0 %v729
        %793 = vmatpush1.bf16.msra.mxu0 %v728
        %794 = vmatprep.subr.bf16.mxu0 %v731
        %795 = vmatpush1.bf16.msra.mxu0 %v730
        %796 = vmatprep.subr.bf16.mxu0 %v733
        %797 = vmatpush1.bf16.msra.mxu0 %v732
        %798 = vmatprep.subr.bf16.mxu0 %v735
        %799 = vmatpush1.bf16.msra.mxu0 %v734
        %800 = vmatprep.subr.bf16.mxu0 %v737
        %801 = vmatpush1.bf16.msra.mxu0 %v736
        %802 = vmatprep.subr.bf16.mxu0 %v739
        %803 = vmatpush1.bf16.msra.mxu0 %v738
        %804 = vmatprep.subr.bf16.mxu0 %v741
        %805 = vmatpush1.bf16.msra.mxu0 %v740
        %806 = vmatprep.subr.bf16.mxu0 %v743
        %807 = vmatpush1.bf16.msra.mxu0 %v742
        %808 = vmatprep.subr.bf16.mxu0 %v745
        %809 = vmatpush1.bf16.msra.mxu0 %v744
        %810 = vmatprep.subr.bf16.mxu0 %v747
        %811 = vmatpush1.bf16.msra.mxu0 %v746
        %812 = vmatprep.subr.bf16.mxu0 %v749
        %813 = vmatpush1.bf16.msra.mxu0 %v748
        %814 = vmatprep.subr.bf16.mxu0 %v751
        %815 = vmatpush1.bf16.msra.mxu0 %v750
        %816 = vmatprep.subr.bf16.mxu0 %v753
        %817 = vmatpush1.bf16.msra.mxu0 %v752
        %818 = vmatprep.subr.bf16.mxu0 %v755
        %819 = vmatpush1.bf16.msra.mxu0 %v754
        %820 = vmatprep.mubr.bf16.mxu0 %v595
        %821 = vmatmul.mubr.bf16.gmra.mrb[0].mxu0 %v594
        %v822 = vpop.f32.mrb[0].mxu0
        %v823 = vadd.f32 0.0, %v822
        %v824 = vpop.f32.mrb[0].mxu0
        %v825 = vadd.f32 0.0, %v824
        %v826 = vpop.f32.mrb[0].mxu0
        %v827 = vadd.f32 0.0, %v826
        %v828 = vpop.f32.mrb[0].mxu0
        %v829 = vadd.f32 0.0, %v828
        %830 = vdwg.mxu0
        %v831 = vadd.f32 %v559, %v823
        %v832 = vadd.f32 %v561, %v825
        %v833 = vadd.f32 %v563, %v827
        %v834 = vadd.f32 %v565, %v829
        %v835 = vlaneseq
        %v836 = vshrl.u32 %v835, 7
        %v837 = vsub.s32 1, %v836
        %v838 = vrot.slane %v251, %v837
        %v839 = vlaneseq
        %v840 = vshrl.u32 %v839, 7
        %v841 = vsub.s32 3, %v840
        %v842 = vrot.slane %v251, %v841
        %v845 = vlaneseq
        %v846 = vshrl.u32 %v845, 7
        %v847 = vsub.s32 1, %v846
        %v848 = vrot.slane %v838, %v847
        %v849 = vlaneseq
        %v850 = vshrl.u32 %v849, 7
        %v851 = vsub.s32 1, %v850
        %v852 = vrot.slane %v842, %v851
        %v853 = vadd.f32 %v831, %v848
        %v854 = vadd.f32 %v832, %v852
        %v855 = vadd.f32 %v833, %v848
        %v856 = vadd.f32 %v834, %v852
        %v857 = vmax.f32 %v853, 0.0
        %v858 = vmax.f32 %v854, 0.0
        %v859 = vmax.f32 %v855, 0.0
        %v860 = vmax.f32 %v856, 0.0
        %861 = vst [vmem:[%s245] sm:$0xff] %v857
        %862 = vst [vmem:[%s245 + $0x8] sm:$0xff] %v858
        %863 = vst [vmem:[%s245 + $0x10] sm:$0xff] %v859
        %864 = vst [vmem:[%s245 + $0x18] sm:$0xff] %v860
        %s865 = sand.u32 %s119, 1
        %s866 = scalar_lea.sflag [#allocation4], %s865
        %s867 = sand.u32 %s119, 1
        %s868 = smul.addr %s867, 32
        %s869 = scalar_lea.vmem [#allocation8], %s868
        // Predicated region
        $region49: #{tpu_custom_call.1} parent=35 // pred_check
          %p870 = pneg %p129
        $region50: #{tpu_custom_call.1} parent=35 // pred_check_branch
          %872 = sbr.rel (%p870) target = $region52
        $region51: #{tpu_custom_call.1} parent=35 // pred_region
          %s873 = smul.u32 2, %s22
          %s875 = ssub.s32 512, 512
          %876 = vsyncadd %s866, %s875
          %s877 = smul.addr %s873, 2
          %s878 = smul.addr %s877, 128
          %s879 = scalar_lea.hbm %s4, %s878
          %s880 = sshll.u32 %s869, 4
          %s881 = int_to_ptr.vmem [resolvable:$true] %s880
          %886 = dma.vmem_to_hbm [thread:$0]  %s881, 512, %s879, %s866, 256, 256, 16
        $region52: #{tpu_custom_call.1} parent=35 // pred_fallthru
          _
      $region36: #{tpu_custom_call.1} parent=5 // pred_fallthru
        _
      %p887 = scmp.le.s32.totalorder 2, %s17
      // Predicated region
      $region53: #{tpu_custom_call.1} parent=5 // pred_check
        %p888 = pneg %p887
      $region54: #{tpu_custom_call.1} parent=5 // pred_check_branch
        %890 = sbr.rel (%p888) target = $region56
      $region55: #{tpu_custom_call.1} parent=5 // pred_region
        %s891 = ssub.s32 %s17, 2
        // Predicated region
        $region57: #{tpu_custom_call.1} parent=55 // pred_check
          %p892 = pneg %p135
        $region58: #{tpu_custom_call.1} parent=55 // pred_check_branch
          %894 = sbr.rel (%p892) target = $region60
        $region59: #{tpu_custom_call.1} parent=55 // pred_region
          %s895 = sand.u32 %s120, 1
          %s896 = scalar_lea.sflag [#allocation4], %s895
          %s897 = sand.u32 %s120, 1
          %s898 = smul.addr %s897, 32
          %s899 = scalar_lea.vmem [#allocation8], %s898
          %900 = dma.done %s896, 512
        $region60: #{tpu_custom_call.1} parent=55 // pred_fallthru
          _
      $region56: #{tpu_custom_call.1} parent=5 // pred_fallthru
        _
    $region6: #{tpu_custom_call.1} parent=1 // loop_footer
      %s21 = sadd.s32 1, %s17
    $region7: #{tpu_custom_call.1} parent=1 // loop_footer_branch
      %16 = sbr.rel target = $region3
    $region8: #{tpu_custom_call.1} parent=1 // loop_exit
      _
    %901 = vsyncpa [#allocation3], 1
    %s902 = scalar_lea.sflag [#allocation3], 1
    %903 = vsyncpa %s902, 1
    %904 = vsyncpa [#allocation6], 1
    %905 = vsyncpa [#allocation4], 1
    %s906 = scalar_lea.sflag [#allocation4], 1
    %907 = vsyncpa %s906, 1

</llo_original>
